<compile_context>
chip_gen: v7x
topology: tpu7x:2x2x1
jax: 0.10.0
libtpu: 0.0.40
codegen_flags: <defaults>
</compile_context>

<pallas_src>
import functools

import jax
import jax.numpy as jnp
from jax.experimental import pallas as pl
from jax.experimental.pallas import tpu as pltpu


def _round_up(x, m):
    return ((x + m - 1) // m) * m


# ---------------------------------------------------------------------------
# Phase 1: batched input projection  gates_x = onehot(tok) @ emb @ W_ih + bias
# One grid step handles CHUNK tokens (M = CHUNK on the MXU); chunks are
# independent, so the grid axis is "parallel".
# ---------------------------------------------------------------------------
def _input_proj_kernel(tok_ref, emb_ref, wih_ref, b_ref, gx_ref):
    chunk = tok_ref.shape[0]
    vp = emb_ref.shape[0]
    tok = tok_ref[...]                                            # (CHUNK, 1) int32
    lane = jax.lax.broadcasted_iota(jnp.int32, (chunk, vp), 1)    # (CHUNK, Vp)
    onehot = jnp.where(lane == tok, 1.0, 0.0).astype(emb_ref.dtype)
    # Exact gather: each row of x equals the selected bf16 embedding row.
    x = jnp.dot(onehot, emb_ref[...],
                preferred_element_type=jnp.float32).astype(emb_ref.dtype)
    gx_ref[...] = (jnp.dot(x, wih_ref[...], preferred_element_type=jnp.float32)
                   + b_ref[...])


# ---------------------------------------------------------------------------
# Phase 2: sequential LSTM recurrence, CHUNK timesteps per grid iteration.
# hf_ref / cf_ref are revisited output blocks that double as the carried state.
# ---------------------------------------------------------------------------
def _recurrence_kernel(gx_ref, h0_ref, c0_ref, whh_ref,
                       out_ref, hf_ref, cf_ref, out_buf, *, seq_len):
    chunk = gx_ref.shape[0]
    hp = hf_ref.shape[-1]
    c_idx = pl.program_id(0)

    @pl.when(c_idx == 0)
    def _():
        hf_ref[...] = h0_ref[...]
        cf_ref[...] = c0_ref[...]

    w_hh = whh_ref[...]                 # (Hp, 4*Hp) bf16 — hoisted out of the loop

    def step(t, carry):
        h_prev, c_prev = carry          # (1, Hp) f32
        gates = gx_ref[pl.ds(t, 1), :] + jnp.dot(
            h_prev.astype(w_hh.dtype), w_hh, preferred_element_type=jnp.float32)
        sig = jax.nn.sigmoid(gates[:, :3 * hp])          # [i | f | o] contiguous
        i_g = sig[:, 0 * hp:1 * hp]
        f_g = sig[:, 1 * hp:2 * hp]
        o_g = sig[:, 2 * hp:3 * hp]
        g_g = jnp.tanh(gates[:, 3 * hp:4 * hp])
        c_new = f_g * c_prev + i_g * g_g
        h_new = o_g * jnp.tanh(c_new)
        # Mask padded timesteps so the carried state is untouched past seq_len.
        valid = (c_idx * chunk + t) < seq_len
        h_new = jnp.where(valid, h_new, h_prev)
        c_new = jnp.where(valid, c_new, c_prev)
        out_buf[pl.ds(t, 1), :] = h_new
        return h_new, c_new

    h_fin, c_fin = jax.lax.fori_loop(
        0, chunk, step, (hf_ref[...], cf_ref[...]), unroll=True)
    hf_ref[...] = h_fin
    cf_ref[...] = c_fin
    out_ref[...] = out_buf[...].astype(out_ref.dtype)   # one dense (CHUNK, Hp) store


# ---------------------------------------------------------------------------
# Host-side parameter packing (done once).
# ---------------------------------------------------------------------------
def prepare_params(emb, w_ih, w_hh, b_ih, b_hh, weight_dtype=jnp.bfloat16):
    V, E = emb.shape
    H = w_hh.shape[1]
    Hp = _round_up(H, 128)
    Ep = _round_up(E, 128)
    Vp = _round_up(V, 128)
    perm = jnp.asarray([0, 1, 3, 2])        # torch order [i,f,g,o] -> [i,f,o,g]

    def pack(w, K, Kp):
        # w: (4H, K) torch layout -> (Kp, 4*Hp) kernel layout, gates reordered,
        # zero-padded so padded lanes provably stay zero through the recurrence.
        w_t = w.T.reshape(K, 4, H)[:, perm, :]
        w_t = jnp.pad(w_t, ((0, Kp - K), (0, 0), (0, Hp - H)))
        return w_t.reshape(Kp, 4 * Hp).astype(weight_dtype)

    w_ih_p = pack(w_ih, E, Ep)              # (Ep, 4*Hp) bf16
    w_hh_p = pack(w_hh, H, Hp)              # (Hp, 4*Hp) bf16

    b = (b_ih + b_hh).astype(jnp.float32).reshape(4, H)[perm, :]
    bias_p = jnp.pad(b, ((0, 0), (0, Hp - H))).reshape(1, 4 * Hp)

    emb_p = jnp.pad(emb.astype(weight_dtype), ((0, Vp - V), (0, Ep - E)))
    return dict(emb=emb_p, w_ih=w_ih_p, w_hh=w_hh_p, bias=bias_p, H=H, V=V)


# ---------------------------------------------------------------------------
# Wrappers.
# ---------------------------------------------------------------------------
def encoder_rnn_sequence(tokens, hidden, params, chunk=32):
    emb_p, w_ih_p, w_hh_p, bias_p = (params["emb"], params["w_ih"],
                                     params["w_hh"], params["bias"])
    H, V = params["H"], params["V"]
    Vp, Ep = emb_p.shape
    Hp = w_hh_p.shape[0]
    G = 4 * Hp

    tokens = jnp.clip(jnp.asarray(tokens, jnp.int32).reshape(-1), 0, V - 1)
    T = int(tokens.shape[0])

    # Timesteps per grid iteration (sublane aligned; >=16 when multi-chunk so
    # the bf16 output block stays tile-aligned).
    chunk = _round_up(min(max(int(chunk), 8), _round_up(T, 8)), 8)
    Tp = _round_up(T, chunk)
    if Tp > chunk:
        chunk = _round_up(chunk, 16)
        Tp = _round_up(T, chunk)
    n_chunks = Tp // chunk

    tok2d = jnp.zeros((Tp, 1), jnp.int32).at[:T, 0].set(tokens)

    h0, c0 = hidden
    h0p = jnp.zeros((1, Hp), jnp.float32).at[:, :H].set(
        jnp.asarray(h0, jnp.float32).reshape(1, H))
    c0p = jnp.zeros((1, Hp), jnp.float32).at[:, :H].set(
        jnp.asarray(c0, jnp.float32).reshape(1, H))

    # ---- Phase 1: batched input projection (parallel over token chunks) ----
    gates_x = pl.pallas_call(
        _input_proj_kernel,
        out_shape=jax.ShapeDtypeStruct((Tp, G), jnp.float32),
        grid_spec=pltpu.PrefetchScalarGridSpec(
            num_scalar_prefetch=0,
            grid=(n_chunks,),
            in_specs=[
                pl.BlockSpec((chunk, 1), lambda c: (c, 0)),   # token ids
                pl.BlockSpec((Vp, Ep), lambda c: (0, 0)),     # bf16 embedding (resident)
                pl.BlockSpec((Ep, G), lambda c: (0, 0)),      # W_ih (resident)
                pl.BlockSpec((1, G), lambda c: (0, 0)),       # fused bias (resident)
            ],
            out_specs=pl.BlockSpec((chunk, G), lambda c: (c, 0)),
        ),
        compiler_params=pltpu.CompilerParams(dimension_semantics=("parallel",)),
    )(tok2d, emb_p, w_ih_p, bias_p)

    # ---- Phase 2: sequential recurrence, CHUNK steps per grid iteration ----
    out_pad, h_pad, c_pad = pl.pallas_call(
        functools.partial(_recurrence_kernel, seq_len=T),
        out_shape=(jax.ShapeDtypeStruct((Tp, Hp), jnp.bfloat16),  # per-step h (bf16 writeback)
                   jax.ShapeDtypeStruct((1, Hp), jnp.float32),    # final h (f32 carry)
                   jax.ShapeDtypeStruct((1, Hp), jnp.float32)),   # final c (f32 carry)
        grid_spec=pltpu.PrefetchScalarGridSpec(
            num_scalar_prefetch=0,
            grid=(n_chunks,),
            in_specs=[
                pl.BlockSpec((chunk, G), lambda c: (c, 0)),   # precomputed gates_x chunk
                pl.BlockSpec((1, Hp), lambda c: (0, 0)),      # h0
                pl.BlockSpec((1, Hp), lambda c: (0, 0)),      # c0
                pl.BlockSpec((Hp, G), lambda c: (0, 0)),      # W_hh (resident)
            ],
            out_specs=(
                pl.BlockSpec((chunk, Hp), lambda c: (c, 0)),
                pl.BlockSpec((1, Hp), lambda c: (0, 0)),
                pl.BlockSpec((1, Hp), lambda c: (0, 0)),
            ),
            scratch_shapes=[pltpu.VMEM((chunk, Hp), jnp.float32)],
        ),
        compiler_params=pltpu.CompilerParams(dimension_semantics=("arbitrary",)),
    )(gates_x, h0p, c0p, w_hh_p)

    lstm_out = out_pad[:T, :H].astype(jnp.float32).reshape(T, 1, H)
    h_n = h_pad[:, :H].reshape(1, 1, H)
    c_n = c_pad[:, :H].reshape(1, 1, H)
    return lstm_out, (h_n, c_n)


def encoder_rnn_forward(word_input, hidden, params):
    """Exact EncoderRNN.forward(word_input, hidden) semantics (single step)."""
    tok = jnp.asarray(word_input, jnp.int32).reshape((1,))
    lstm_out, hidden_n = encoder_rnn_sequence(tok, hidden, params)
    return lstm_out, hidden_n


# ---------------------------------------------------------------------------
# Pure-JAX reference (PyTorch LSTM math), optionally mirroring bf16 storage.
# ---------------------------------------------------------------------------
def reference_sequence(tokens, hidden, emb, w_ih, w_hh, b_ih, b_hh,
                       compute_dtype=jnp.float32):
    H = w_hh.shape[1]
    h = hidden[0].reshape(1, H).astype(jnp.float32)
    c = hidden[1].reshape(1, H).astype(jnp.float32)
    emb_q = emb.astype(compute_dtype)
    wi = w_ih.T.astype(compute_dtype)       # (E, 4H)
    wh = w_hh.T.astype(compute_dtype)       # (H, 4H)
    b = (b_ih + b_hh).astype(jnp.float32).reshape(1, 4 * H)
    outs = []
    for t in range(int(tokens.shape[0])):
        x = emb_q[tokens[t]].reshape(1, -1)
        gx = jnp.dot(x, wi, preferred_element_type=jnp.float32) + b
        gates = gx + jnp.dot(h.astype(compute_dtype), wh,
                             preferred_element_type=jnp.float32)
        i = jax.nn.sigmoid(gates[:, 0 * H:1 * H])
        f = jax.nn.sigmoid(gates[:, 1 * H:2 * H])
        g = jnp.tanh(gates[:, 2 * H:3 * H])
        o = jax.nn.sigmoid(gates[:, 3 * H:4 * H])
        c = f * c + i * g
        h = o * jnp.tanh(c)
        outs.append(h)
    return (jnp.stack(outs).reshape(-1, 1, H),
            (h.reshape(1, 1, H), c.reshape(1, 1, H)))


if __name__ == "__main__":
    vocab_size, embedding_dim, lstm_out_dim, seq_len = 64, 32, 32, 8

    key = jax.random.PRNGKey(0)
    k_emb, k_wih, k_whh, k_bih, k_bhh, k_tok = jax.random.split(key, 6)
    s = 1.0 / (lstm_out_dim ** 0.5)

    # nn.Embedding / nn.LSTM shaped parameters.
    emb = jax.random.normal(k_emb, (vocab_size, embedding_dim), jnp.float32)
    w_ih = jax.random.uniform(k_wih, (4 * lstm_out_dim, embedding_dim), jnp.float32, -s, s)
    w_hh = jax.random.uniform(k_whh, (4 * lstm_out_dim, lstm_out_dim), jnp.float32, -s, s)
    b_ih = jax.random.uniform(k_bih, (4 * lstm_out_dim,), jnp.float32, -s, s)
    b_hh = jax.random.uniform(k_bhh, (4 * lstm_out_dim,), jnp.float32, -s, s)
    tokens = jax.random.randint(k_tok, (seq_len,), 0, vocab_size, jnp.int32)

    params = prepare_params(emb, w_ih, w_hh, b_ih, b_hh)

    # EncoderRNN.init_hidden(): zeros of shape (1, 1, H) each.
    hidden0 = (jnp.zeros((1, 1, lstm_out_dim), jnp.float32),
               jnp.zeros((1, 1, lstm_out_dim), jnp.float32))

    # Full-sequence encoder pass (phase-1 projection + phase-2 recurrence).
    lstm_outs, (h_n, c_n) = encoder_rnn_sequence(tokens, hidden0, params)
    jax.block_until_ready((lstm_outs, h_n, c_n))

    # Single-step forward(word_input, hidden), matching the PyTorch signature.
    step_out, (h1, c1) = encoder_rnn_forward(tokens[0], hidden0, params)
    jax.block_until_ready((step_out, h1, c1))

    # References: one mirroring the kernel's bf16 storage, one in pure f32.
    ref_outs, (ref_h, ref_c) = reference_sequence(
        tokens, hidden0, emb, w_ih, w_hh, b_ih, b_hh, compute_dtype=jnp.bfloat16)
    ref_f32_outs, _ = reference_sequence(
        tokens, hidden0, emb, w_ih, w_hh, b_ih, b_hh, compute_dtype=jnp.float32)

    assert lstm_outs.shape == (seq_len, 1, lstm_out_dim)
    assert h_n.shape == (1, 1, lstm_out_dim) and c_n.shape == (1, 1, lstm_out_dim)
    assert step_out.shape == (1, 1, lstm_out_dim)

    # Per-step outputs are bf16 on the wire (~4e-3 rounding); the h/c carry is f32.
    assert jnp.allclose(lstm_outs, ref_outs, atol=1e-2, rtol=1e-2)
    assert jnp.allclose(h_n, ref_h, atol=2e-3, rtol=2e-3)
    assert jnp.allclose(c_n, ref_c, atol=2e-3, rtol=2e-3)
    # bf16 weight storage vs pure-f32 PyTorch math stays close.
    assert jnp.allclose(lstm_outs, ref_f32_outs, atol=5e-2, rtol=5e-2)
    # Single-step forward equals the first step of the sequence run.
    assert jnp.allclose(step_out[0], lstm_outs[0], atol=1e-5)
    assert jnp.allclose(h1[0], lstm_outs[0], atol=1e-2)

    print("KERNEL_OK")
</pallas_src>

<mosaic_0001>
module attributes {stable_mosaic.version = 11 : i64} {
  func.func @_input_proj_kernel(%arg0: i32, %arg1: memref<8x1xi32, #tpu.memory_space<vmem>>, %arg2: memref<128x128xbf16, #tpu.memory_space<vmem>>, %arg3: memref<128x512xbf16, #tpu.memory_space<vmem>>, %arg4: memref<1x512xf32, #tpu.memory_space<vmem>>, %arg5: memref<8x512xf32, #tpu.memory_space<vmem>>) attributes {dimension_semantics = [#tpu.dimension_semantics<parallel>], iteration_bounds = array<i64: 1>, scalar_prefetch = 0 : i64, scratch_operands = 0 : i64, tpu.core_type = #tpu.core_type<tc>, window_params = [{transform_indices = @transform_0, window_bounds = array<i64: 8, 1>}, {pipeline_mode = #tpu.pipeline_mode<synchronous>, transform_indices = @transform_1, window_bounds = array<i64: 128, 128>}, {pipeline_mode = #tpu.pipeline_mode<synchronous>, transform_indices = @transform_2, window_bounds = array<i64: 128, 512>}, {pipeline_mode = #tpu.pipeline_mode<synchronous>, transform_indices = @transform_3, window_bounds = array<i64: 1, 512>}, {transform_indices = @transform_4, window_bounds = array<i64: 8, 512>}]} {
    %c0 = arith.constant 0 : index
    %c0_0 = arith.constant 0 : index
    %0 = vector.load %arg1[%c0, %c0_0] : memref<8x1xi32, #tpu.memory_space<vmem>>, vector<8x1xi32>
    %1 = tpu.iota {dimensions = array<i32: 1>} : vector<8x128xi32>
    %2 = vector.broadcast %0 : vector<8x1xi32> to vector<8x128xi32>
    %3 = arith.cmpi eq, %1, %2 : vector<8x128xi32>
    %cst = arith.constant 1.000000e+00 : f32
    %cst_1 = arith.constant 0.000000e+00 : f32
    %4 = vector.broadcast %cst : f32 to vector<8x128xf32>
    %5 = vector.broadcast %cst_1 : f32 to vector<8x128xf32>
    %6 = arith.select %3, %4, %5 : vector<8x128xi1>, vector<8x128xf32>
    %7 = arith.truncf %6 : vector<8x128xf32> to vector<8x128xbf16>
    %c0_2 = arith.constant 0 : index
    %c0_3 = arith.constant 0 : index
    %8 = vector.load %arg2[%c0_2, %c0_3] : memref<128x128xbf16, #tpu.memory_space<vmem>>, vector<128x128xbf16>
    %cst_4 = arith.constant dense<0.000000e+00> : vector<8x128xf32>
    %9 = tpu.matmul %7, %8, %cst_4 {dimension_numbers = #tpu.dot_dimension_numbers<[1], [0], [0], [1], [0, 0, 1, 1], [], []>} : vector<8x128xbf16>, vector<128x128xbf16>, vector<8x128xf32> -> vector<8x128xf32>
    %10 = arith.truncf %9 : vector<8x128xf32> to vector<8x128xbf16>
    %c0_5 = arith.constant 0 : index
    %c0_6 = arith.constant 0 : index
    %11 = vector.load %arg3[%c0_5, %c0_6] : memref<128x512xbf16, #tpu.memory_space<vmem>>, vector<128x512xbf16>
    %cst_7 = arith.constant dense<0.000000e+00> : vector<8x512xf32>
    %12 = tpu.matmul %10, %11, %cst_7 {dimension_numbers = #tpu.dot_dimension_numbers<[1], [0], [0], [1], [0, 0, 1, 1], [], []>} : vector<8x128xbf16>, vector<128x512xbf16>, vector<8x512xf32> -> vector<8x512xf32>
    %c0_8 = arith.constant 0 : index
    %c0_9 = arith.constant 0 : index
    %13 = vector.load %arg4[%c0_8, %c0_9] : memref<1x512xf32, #tpu.memory_space<vmem>>, vector<1x512xf32>
    %14 = vector.broadcast %13 : vector<1x512xf32> to vector<8x512xf32>
    %15 = arith.addf %12, %14 : vector<8x512xf32>
    %c0_10 = arith.constant 0 : index
    %c0_11 = arith.constant 0 : index
    %16 = vector.load %arg5[%c0_10, %c0_11] : memref<8x512xf32, #tpu.memory_space<vmem>>, vector<8x512xf32>
    tpu.vector_store %arg5[%c0_10, %c0_11], %15 {strides = array<i32>} : memref<8x512xf32, #tpu.memory_space<vmem>>, vector<8x512xf32>,
    return
  }
  func.func @transform_0(%arg0: i32) -> (i32, i32) {
    %c0_i32 = arith.constant 0 : i32
    %c0_i32_0 = arith.constant 0 : i32
    return %arg0, %c0_i32 : i32, i32
  }
  func.func @transform_1(%arg0: i32) -> (i32, i32) {
    %c0_i32 = arith.constant 0 : i32
    %c0_i32_0 = arith.constant 0 : i32
    %c0_i32_1 = arith.constant 0 : i32
    return %c0_i32, %c0_i32_0 : i32, i32
  }
  func.func @transform_2(%arg0: i32) -> (i32, i32) {
    %c0_i32 = arith.constant 0 : i32
    %c0_i32_0 = arith.constant 0 : i32
    %c0_i32_1 = arith.constant 0 : i32
    return %c0_i32, %c0_i32_0 : i32, i32
  }
  func.func @transform_3(%arg0: i32) -> (i32, i32) {
    %c0_i32 = arith.constant 0 : i32
    %c0_i32_0 = arith.constant 0 : i32
    %c0_i32_1 = arith.constant 0 : i32
    return %c0_i32, %c0_i32_0 : i32, i32
  }
  func.func @transform_4(%arg0: i32) -> (i32, i32) {
    %c0_i32 = arith.constant 0 : i32
    %c0_i32_0 = arith.constant 0 : i32
    return %arg0, %c0_i32 : i32, i32
  }
}

</mosaic_0001>

<llo_original>
// kernel: tpu_custom_call.1
$region0: #{tpu_custom_call.1}
  #allocation0 [shape = 'u32[]', space=smem, size = 0x4, offset = 0x4, fixed_abs, tag = 'smem constant byte address 0x4 - core index']
  #allocation1 [shape = 'u32[144,128]{1,0:T(1,128)}', space=vmem, size = 0x12000, scoped, tag = 'internal scratch']
  %s0 = inlined_call_operand.vmem [shape: s32[8,1], index: 0, kind: input, shape index: {}]
  %s1 = inlined_call_operand.hbm [shape: bf16[128,128], index: 1, kind: input, shape index: {}]
  %s2 = inlined_call_operand.hbm [shape: bf16[128,512], index: 2, kind: input, shape index: {}]
  %s3 = inlined_call_operand.vmem [shape: f32[1,512], index: 3, kind: input, shape index: {}]
  %s4 = inlined_call_operand.hbm [shape: f32[8,512], index: 4, kind: output, shape index: {}]
  %s5 = sld [smem:[#allocation0]]
  $region34: #{tpu_custom_call.1} parent=0
    _
  %s7 = ssub.s32 1, %s5
  %s8 = scalar_select 0, %s7, %s5
  $region1: #{tpu_custom_call.1} parent=0
    #allocation2 [shape = 'u8[32768]{0}', space=vmem, size = 0x8000, scoped, tag = 'input window, operand 1, single buffered']
    #allocation3 [shape = 's32[1]{0}', space=sflag, size = 0x4, scoped, tag = 'scoped memory for tpu_custom_call.1']
    #allocation4 [shape = 's32[1]{0}', space=sflag, size = 0x4, scoped, tag = 'scoped memory for tpu_custom_call.1']
    #allocation5 [shape = 'u8[131072]{0}', space=vmem, size = 0x20000, scoped, tag = 'input window, operand 2, single buffered']
    #allocation6 [shape = 's32[1]{0}', space=sflag, size = 0x4, scoped, tag = 'scoped memory for tpu_custom_call.1']
    #allocation7 [shape = 'u8[16384]{0}', space=vmem, size = 0x4000, scoped, tag = 'output window, operand 0, single buffered']
    %9 = vsyncpa [#allocation3], 0
    %10 = vsyncpa [#allocation6], 0
    %11 = vsyncpa [#allocation4], 0
    // Predicated region
    $region2: #{tpu_custom_call.1} parent=1 // pred_check
      _
    $region3: #{tpu_custom_call.1} parent=1 // pred_check_branch
      %13 = sbr.rel (0) target = $region5
    $region4: #{tpu_custom_call.1} parent=1 // pred_region
      _
    $region5: #{tpu_custom_call.1} parent=1 // pred_fallthru
      _
    // Predicated region
    $region6: #{tpu_custom_call.1} parent=1 // pred_check
      _
    $region7: #{tpu_custom_call.1} parent=1 // pred_check_branch
      %15 = sbr.rel (0) target = $region9
    $region8: #{tpu_custom_call.1} parent=1 // pred_region
      %s17 = ssub.s32 1024, 1024
      %18 = vsyncadd [#allocation3], %s17
      %s19 = sshll.u32 [#allocation2], 4
      %s20 = int_to_ptr.vmem [resolvable:$true] %s19
      %25 = dma.hbm_to_vmem [thread:$0]  %s1, 1024, %s20, [#allocation3], 64, 64, 4
    $region9: #{tpu_custom_call.1} parent=1 // pred_fallthru
      _
    // Predicated region
    $region10: #{tpu_custom_call.1} parent=1 // pred_check
      _
    $region11: #{tpu_custom_call.1} parent=1 // pred_check_branch
      %27 = sbr.rel (0) target = $region13
    $region12: #{tpu_custom_call.1} parent=1 // pred_region
      %s29 = ssub.s32 4096, 4096
      %30 = vsyncadd [#allocation6], %s29
      %s31 = sshll.u32 [#allocation5], 4
      %s32 = int_to_ptr.vmem [resolvable:$true] %s31
      %37 = dma.hbm_to_vmem [thread:$0]  %s2, 4096, %s32, [#allocation6], 256, 256, 16
    $region13: #{tpu_custom_call.1} parent=1 // pred_fallthru
      _
    // Predicated region
    $region14: #{tpu_custom_call.1} parent=1 // pred_check
      _
    $region15: #{tpu_custom_call.1} parent=1 // pred_check_branch
      %39 = sbr.rel (0) target = $region17
    $region16: #{tpu_custom_call.1} parent=1 // pred_region
      _
    $region17: #{tpu_custom_call.1} parent=1 // pred_fallthru
      _
    // Predicated region
    $region18: #{tpu_custom_call.1} parent=1 // pred_check
      _
    $region19: #{tpu_custom_call.1} parent=1 // pred_check_branch
      %41 = sbr.rel (0) target = $region21
    $region20: #{tpu_custom_call.1} parent=1 // pred_region
      %42 = dma.done [#allocation3], 1024
    $region21: #{tpu_custom_call.1} parent=1 // pred_fallthru
      _
    // Predicated region
    $region22: #{tpu_custom_call.1} parent=1 // pred_check
      _
    $region23: #{tpu_custom_call.1} parent=1 // pred_check_branch
      %44 = sbr.rel (0) target = $region25
    $region24: #{tpu_custom_call.1} parent=1 // pred_region
      %45 = dma.done [#allocation6], 4096
    $region25: #{tpu_custom_call.1} parent=1 // pred_fallthru
      _
    %v47 = vld [vmem:[%s0] sm:$0xff]
    %v48 = vlaneseq
    %v49 = vand.u32 %v48, 127
    %50 = vset.pattern.permute.xlu0 0
    %51 = vperm.xlu0 %50, %v47
    %v52 = vpop.permute.xlu0 %51
    %vm53 = vcmp.eq.s32.totalorder %v49, %v52
    %v54 = vsel %vm53, 1.0, 0.0
    %v55 = vpack.c.bf16 %v54, %v54
    %v56 = vld [vmem:[#allocation2] sm:$0xf]
    %v57 = vld [vmem:[#allocation2 + $0x4] sm:$0xf]
    %v58 = vld [vmem:[#allocation2 + $0x8] sm:$0xf]
    %v59 = vld [vmem:[#allocation2 + $0xc] sm:$0xf]
    %v60 = vld [vmem:[#allocation2 + $0x10] sm:$0xf]
    %v61 = vld [vmem:[#allocation2 + $0x14] sm:$0xf]
    %v62 = vld [vmem:[#allocation2 + $0x18] sm:$0xf]
    %v63 = vld [vmem:[#allocation2 + $0x1c] sm:$0xf]
    %v64 = vld [vmem:[#allocation2 + $0x20] sm:$0xf]
    %v65 = vld [vmem:[#allocation2 + $0x24] sm:$0xf]
    %v66 = vld [vmem:[#allocation2 + $0x28] sm:$0xf]
    %v67 = vld [vmem:[#allocation2 + $0x2c] sm:$0xf]
    %v68 = vld [vmem:[#allocation2 + $0x30] sm:$0xf]
    %v69 = vld [vmem:[#allocation2 + $0x34] sm:$0xf]
    %v70 = vld [vmem:[#allocation2 + $0x38] sm:$0xf]
    %v71 = vld [vmem:[#allocation2 + $0x3c] sm:$0xf]
    %v88 = vunpack.c.l.b16 %v56
    %v89 = vunpack.c.l.b16 %v57
    %v90 = vunpack.c.l.b16 %v58
    %v91 = vunpack.c.l.b16 %v59
    %v92 = vunpack.c.l.b16 %v60
    %v93 = vunpack.c.l.b16 %v61
    %v94 = vunpack.c.l.b16 %v62
    %v95 = vunpack.c.l.b16 %v63
    %v96 = vunpack.c.l.b16 %v64
    %v97 = vunpack.c.l.b16 %v65
    %v98 = vunpack.c.l.b16 %v66
    %v99 = vunpack.c.l.b16 %v67
    %v100 = vunpack.c.l.b16 %v68
    %v101 = vunpack.c.l.b16 %v69
    %v102 = vunpack.c.l.b16 %v70
    %v103 = vunpack.c.l.b16 %v71
    %v104 = vpack.c.b16 %v89, %v88
    %v105 = vpack.c.b16 %v91, %v90
    %v106 = vpack.c.b16 %v93, %v92
    %v107 = vpack.c.b16 %v95, %v94
    %v108 = vpack.c.b16 %v97, %v96
    %v109 = vpack.c.b16 %v99, %v98
    %v110 = vpack.c.b16 %v101, %v100
    %v111 = vpack.c.b16 %v103, %v102
    %120 = vmatprep.subr.bf16.mxu0 0
    %121 = vmatpush1.bf16.msra.mxu0 %v104
    %122 = vmatprep.subr.bf16.mxu0 0
    %123 = vmatpush1.bf16.msra.mxu0 %v105
    %124 = vmatprep.subr.bf16.mxu0 0
    %125 = vmatpush1.bf16.msra.mxu0 %v106
    %126 = vmatprep.subr.bf16.mxu0 0
    %127 = vmatpush1.bf16.msra.mxu0 %v107
    %128 = vmatprep.subr.bf16.mxu0 0
    %129 = vmatpush1.bf16.msra.mxu0 %v108
    %130 = vmatprep.subr.bf16.mxu0 0
    %131 = vmatpush1.bf16.msra.mxu0 %v109
    %132 = vmatprep.subr.bf16.mxu0 0
    %133 = vmatpush1.bf16.msra.mxu0 %v110
    %134 = vmatprep.subr.bf16.mxu0 0
    %135 = vmatpush1.bf16.msra.mxu0 %v111
    %136 = vmatprep.subr.bf16.mxu0 0
    %137 = vmatpush1.bf16.msra.mxu0 0
    %138 = vmatprep.subr.bf16.mxu0 0
    %139 = vmatpush1.bf16.msra.mxu0 0
    %140 = vmatprep.subr.bf16.mxu0 0
    %141 = vmatpush1.bf16.msra.mxu0 0
    %142 = vmatprep.subr.bf16.mxu0 0
    %143 = vmatpush1.bf16.msra.mxu0 0
    %144 = vmatprep.subr.bf16.mxu0 0
    %145 = vmatpush1.bf16.msra.mxu0 0
    %146 = vmatprep.subr.bf16.mxu0 0
    %147 = vmatpush1.bf16.msra.mxu0 0
    %148 = vmatprep.subr.bf16.mxu0 0
    %149 = vmatpush1.bf16.msra.mxu0 0
    %150 = vmatprep.subr.bf16.mxu0 0
    %151 = vmatpush1.bf16.msra.mxu0 0
    %152 = vmatprep.mubr.bf16.mxu0 0
    %153 = vmatmul.mubr.bf16.gmra.mrb[0].mxu0 %v55
    %v154 = vpop.f32.mrb[0].mxu0
    %v155 = vadd.f32 0.0, %v154
    %v156 = vpop.f32.mrb[0].mxu0
    %v157 = vpop.f32.mrb[0].mxu0
    %v158 = vpop.f32.mrb[0].mxu0
    %159 = vdwg.mxu0
    %v160 = vpack.c.bf16 %v155, %v155
    %v161 = vld [vmem:[#allocation5] sm:$0xff]
    %v162 = vld [vmem:[#allocation5 + $0x8] sm:$0xff]
    %v163 = vld [vmem:[#allocation5 + $0x10] sm:$0xff]
    %v164 = vld [vmem:[#allocation5 + $0x18] sm:$0xff]
    %v165 = vld [vmem:[#allocation5 + $0x20] sm:$0xff]
    %v166 = vld [vmem:[#allocation5 + $0x28] sm:$0xff]
    %v167 = vld [vmem:[#allocation5 + $0x30] sm:$0xff]
    %v168 = vld [vmem:[#allocation5 + $0x38] sm:$0xff]
    %v169 = vld [vmem:[#allocation5 + $0x40] sm:$0xff]
    %v170 = vld [vmem:[#allocation5 + $0x48] sm:$0xff]
    %v171 = vld [vmem:[#allocation5 + $0x50] sm:$0xff]
    %v172 = vld [vmem:[#allocation5 + $0x58] sm:$0xff]
    %v173 = vld [vmem:[#allocation5 + $0x60] sm:$0xff]
    %v174 = vld [vmem:[#allocation5 + $0x68] sm:$0xff]
    %v175 = vld [vmem:[#allocation5 + $0x70] sm:$0xff]
    %v176 = vld [vmem:[#allocation5 + $0x78] sm:$0xff]
    %v177 = vld [vmem:[#allocation5 + $0x80] sm:$0xff]
    %v178 = vld [vmem:[#allocation5 + $0x88] sm:$0xff]
    %v179 = vld [vmem:[#allocation5 + $0x90] sm:$0xff]
    %v180 = vld [vmem:[#allocation5 + $0x98] sm:$0xff]
    %v181 = vld [vmem:[#allocation5 + $0xa0] sm:$0xff]
    %v182 = vld [vmem:[#allocation5 + $0xa8] sm:$0xff]
    %v183 = vld [vmem:[#allocation5 + $0xb0] sm:$0xff]
    %v184 = vld [vmem:[#allocation5 + $0xb8] sm:$0xff]
    %v185 = vld [vmem:[#allocation5 + $0xc0] sm:$0xff]
    %v186 = vld [vmem:[#allocation5 + $0xc8] sm:$0xff]
    %v187 = vld [vmem:[#allocation5 + $0xd0] sm:$0xff]
    %v188 = vld [vmem:[#allocation5 + $0xd8] sm:$0xff]
    %v189 = vld [vmem:[#allocation5 + $0xe0] sm:$0xff]
    %v190 = vld [vmem:[#allocation5 + $0xe8] sm:$0xff]
    %v191 = vld [vmem:[#allocation5 + $0xf0] sm:$0xff]
    %v192 = vld [vmem:[#allocation5 + $0xf8] sm:$0xff]
    %v193 = vld [vmem:[%s3] sm:$0xf]
    %v195 = vlaneseq
    %v196 = vshrl.u32 %v195, 7
    %v197 = vsub.s32 0, %v196
    %v198 = vrot.slane %v193, %v197
    %v199 = vlaneseq
    %v200 = vshrl.u32 %v199, 7
    %v201 = vsub.s32 1, %v200
    %v202 = vrot.slane %v193, %v201
    %v203 = vlaneseq
    %v204 = vshrl.u32 %v203, 7
    %v205 = vsub.s32 2, %v204
    %v206 = vrot.slane %v193, %v205
    %v207 = vlaneseq
    %v208 = vshrl.u32 %v207, 7
    %v209 = vsub.s32 3, %v208
    %v210 = vrot.slane %v193, %v209
    %v247 = vunpack.c.l.b16 %v161
    %v248 = vunpack.c.h.b16 %v161
    %v249 = vunpack.c.l.b16 %v162
    %v250 = vunpack.c.h.b16 %v162
    %v251 = vunpack.c.l.b16 %v163
    %v252 = vunpack.c.h.b16 %v163
    %v253 = vunpack.c.l.b16 %v164
    %v254 = vunpack.c.h.b16 %v164
    %v255 = vunpack.c.l.b16 %v165
    %v256 = vunpack.c.h.b16 %v165
    %v257 = vunpack.c.l.b16 %v166
    %v258 = vunpack.c.h.b16 %v166
    %v259 = vunpack.c.l.b16 %v167
    %v260 = vunpack.c.h.b16 %v167
    %v261 = vunpack.c.l.b16 %v168
    %v262 = vunpack.c.h.b16 %v168
    %v263 = vunpack.c.l.b16 %v169
    %v264 = vunpack.c.h.b16 %v169
    %v265 = vunpack.c.l.b16 %v170
    %v266 = vunpack.c.h.b16 %v170
    %v267 = vunpack.c.l.b16 %v171
    %v268 = vunpack.c.h.b16 %v171
    %v269 = vunpack.c.l.b16 %v172
    %v270 = vunpack.c.h.b16 %v172
    %v271 = vunpack.c.l.b16 %v173
    %v272 = vunpack.c.h.b16 %v173
    %v273 = vunpack.c.l.b16 %v174
    %v274 = vunpack.c.h.b16 %v174
    %v275 = vunpack.c.l.b16 %v175
    %v276 = vunpack.c.h.b16 %v175
    %v277 = vunpack.c.l.b16 %v176
    %v278 = vunpack.c.h.b16 %v176
    %v279 = vunpack.c.l.b16 %v177
    %v280 = vunpack.c.h.b16 %v177
    %v281 = vunpack.c.l.b16 %v178
    %v282 = vunpack.c.h.b16 %v178
    %v283 = vunpack.c.l.b16 %v179
    %v284 = vunpack.c.h.b16 %v179
    %v285 = vunpack.c.l.b16 %v180
    %v286 = vunpack.c.h.b16 %v180
    %v287 = vunpack.c.l.b16 %v181
    %v288 = vunpack.c.h.b16 %v181
    %v289 = vunpack.c.l.b16 %v182
    %v290 = vunpack.c.h.b16 %v182
    %v291 = vunpack.c.l.b16 %v183
    %v292 = vunpack.c.h.b16 %v183
    %v293 = vunpack.c.l.b16 %v184
    %v294 = vunpack.c.h.b16 %v184
    %v295 = vunpack.c.l.b16 %v185
    %v296 = vunpack.c.h.b16 %v185
    %v297 = vunpack.c.l.b16 %v186
    %v298 = vunpack.c.h.b16 %v186
    %v299 = vunpack.c.l.b16 %v187
    %v300 = vunpack.c.h.b16 %v187
    %v301 = vunpack.c.l.b16 %v188
    %v302 = vunpack.c.h.b16 %v188
    %v303 = vunpack.c.l.b16 %v189
    %v304 = vunpack.c.h.b16 %v189
    %v305 = vunpack.c.l.b16 %v190
    %v306 = vunpack.c.h.b16 %v190
    %v307 = vunpack.c.l.b16 %v191
    %v308 = vunpack.c.h.b16 %v191
    %v309 = vunpack.c.l.b16 %v192
    %v310 = vunpack.c.h.b16 %v192
    %v311 = vpack.c.b16 %v251, %v247
    %v312 = vpack.c.b16 %v252, %v248
    %v313 = vpack.c.b16 %v253, %v249
    %v314 = vpack.c.b16 %v254, %v250
    %v315 = vpack.c.b16 %v259, %v255
    %v316 = vpack.c.b16 %v260, %v256
    %v317 = vpack.c.b16 %v261, %v257
    %v318 = vpack.c.b16 %v262, %v258
    %v319 = vpack.c.b16 %v267, %v263
    %v320 = vpack.c.b16 %v268, %v264
    %v321 = vpack.c.b16 %v269, %v265
    %v322 = vpack.c.b16 %v270, %v266
    %v323 = vpack.c.b16 %v275, %v271
    %v324 = vpack.c.b16 %v276, %v272
    %v325 = vpack.c.b16 %v277, %v273
    %v326 = vpack.c.b16 %v278, %v274
    %v327 = vpack.c.b16 %v283, %v279
    %v328 = vpack.c.b16 %v284, %v280
    %v329 = vpack.c.b16 %v285, %v281
    %v330 = vpack.c.b16 %v286, %v282
    %v331 = vpack.c.b16 %v291, %v287
    %v332 = vpack.c.b16 %v292, %v288
    %v333 = vpack.c.b16 %v293, %v289
    %v334 = vpack.c.b16 %v294, %v290
    %v335 = vpack.c.b16 %v299, %v295
    %v336 = vpack.c.b16 %v300, %v296
    %v337 = vpack.c.b16 %v301, %v297
    %v338 = vpack.c.b16 %v302, %v298
    %v339 = vpack.c.b16 %v307, %v303
    %v340 = vpack.c.b16 %v308, %v304
    %v341 = vpack.c.b16 %v309, %v305
    %v342 = vpack.c.b16 %v310, %v306
    %375 = vmatprep.subr.bf16.mxu0 %v312
    %376 = vmatpush1.bf16.msra.mxu0 %v311
    %377 = vmatprep.subr.bf16.mxu0 %v316
    %378 = vmatpush1.bf16.msra.mxu0 %v315
    %379 = vmatprep.subr.bf16.mxu0 %v320
    %380 = vmatpush1.bf16.msra.mxu0 %v319
    %381 = vmatprep.subr.bf16.mxu0 %v324
    %382 = vmatpush1.bf16.msra.mxu0 %v323
    %383 = vmatprep.subr.bf16.mxu0 %v328
    %384 = vmatpush1.bf16.msra.mxu0 %v327
    %385 = vmatprep.subr.bf16.mxu0 %v332
    %386 = vmatpush1.bf16.msra.mxu0 %v331
    %387 = vmatprep.subr.bf16.mxu0 %v336
    %388 = vmatpush1.bf16.msra.mxu0 %v335
    %389 = vmatprep.subr.bf16.mxu0 %v340
    %390 = vmatpush1.bf16.msra.mxu0 %v339
    %391 = vmatprep.subr.bf16.mxu0 0
    %392 = vmatpush1.bf16.msra.mxu0 0
    %393 = vmatprep.subr.bf16.mxu0 0
    %394 = vmatpush1.bf16.msra.mxu0 0
    %395 = vmatprep.subr.bf16.mxu0 0
    %396 = vmatpush1.bf16.msra.mxu0 0
    %397 = vmatprep.subr.bf16.mxu0 0
    %398 = vmatpush1.bf16.msra.mxu0 0
    %399 = vmatprep.subr.bf16.mxu0 0
    %400 = vmatpush1.bf16.msra.mxu0 0
    %401 = vmatprep.subr.bf16.mxu0 0
    %402 = vmatpush1.bf16.msra.mxu0 0
    %403 = vmatprep.subr.bf16.mxu0 0
    %404 = vmatpush1.bf16.msra.mxu0 0
    %405 = vmatprep.subr.bf16.mxu0 0
    %406 = vmatpush1.bf16.msra.mxu0 0
    %407 = vmatprep.mubr.bf16.mxu0 0
    %408 = vmatmul.mubr.bf16.gmra.mrb[0].mxu0 %v160
    %v409 = vpop.f32.mrb[0].mxu0
    %v410 = vadd.f32 %v198, %v409
    %v411 = vpop.f32.mrb[0].mxu0
    %v412 = vadd.f32 %v202, %v411
    %v413 = vpop.f32.mrb[0].mxu0
    %v414 = vpop.f32.mrb[0].mxu0
    %415 = vdwg.mxu0
    %416 = vmatprep.subr.bf16.mxu0 %v314
    %417 = vmatpush1.bf16.msra.mxu0 %v313
    %418 = vmatprep.subr.bf16.mxu0 %v318
    %419 = vmatpush1.bf16.msra.mxu0 %v317
    %420 = vmatprep.subr.bf16.mxu0 %v322
    %421 = vmatpush1.bf16.msra.mxu0 %v321
    %422 = vmatprep.subr.bf16.mxu0 %v326
    %423 = vmatpush1.bf16.msra.mxu0 %v325
    %424 = vmatprep.subr.bf16.mxu0 %v330
    %425 = vmatpush1.bf16.msra.mxu0 %v329
    %426 = vmatprep.subr.bf16.mxu0 %v334
    %427 = vmatpush1.bf16.msra.mxu0 %v333
    %428 = vmatprep.subr.bf16.mxu0 %v338
    %429 = vmatpush1.bf16.msra.mxu0 %v337
    %430 = vmatprep.subr.bf16.mxu0 %v342
    %431 = vmatpush1.bf16.msra.mxu0 %v341
    %432 = vmatprep.subr.bf16.mxu0 0
    %433 = vmatpush1.bf16.msra.mxu0 0
    %434 = vmatprep.subr.bf16.mxu0 0
    %435 = vmatpush1.bf16.msra.mxu0 0
    %436 = vmatprep.subr.bf16.mxu0 0
    %437 = vmatpush1.bf16.msra.mxu0 0
    %438 = vmatprep.subr.bf16.mxu0 0
    %439 = vmatpush1.bf16.msra.mxu0 0
    %440 = vmatprep.subr.bf16.mxu0 0
    %441 = vmatpush1.bf16.msra.mxu0 0
    %442 = vmatprep.subr.bf16.mxu0 0
    %443 = vmatpush1.bf16.msra.mxu0 0
    %444 = vmatprep.subr.bf16.mxu0 0
    %445 = vmatpush1.bf16.msra.mxu0 0
    %446 = vmatprep.subr.bf16.mxu0 0
    %447 = vmatpush1.bf16.msra.mxu0 0
    %448 = vmatprep.mubr.bf16.mxu0 0
    %449 = vmatmul.mubr.bf16.gmra.mrb[0].mxu0 %v160
    %v450 = vpop.f32.mrb[0].mxu0
    %v451 = vadd.f32 %v206, %v450
    %v452 = vpop.f32.mrb[0].mxu0
    %v453 = vadd.f32 %v210, %v452
    %v454 = vpop.f32.mrb[0].mxu0
    %v455 = vpop.f32.mrb[0].mxu0
    %456 = vdwg.mxu0
    %457 = vst [vmem:[#allocation7] sm:$0xff] %v410
    %458 = vst [vmem:[#allocation7 + $0x8] sm:$0xff] %v412
    %459 = vst [vmem:[#allocation7 + $0x10] sm:$0xff] %v451
    %460 = vst [vmem:[#allocation7 + $0x18] sm:$0xff] %v453
    // Predicated region
    $region26: #{tpu_custom_call.1} parent=1 // pred_check
      _
    $region27: #{tpu_custom_call.1} parent=1 // pred_check_branch
      %462 = sbr.rel (0) target = $region29
    $region28: #{tpu_custom_call.1} parent=1 // pred_region
      %s464 = ssub.s32 512, 512
      %465 = vsyncadd [#allocation4], %s464
      %s467 = sshll.u32 [#allocation7], 4
      %s468 = int_to_ptr.vmem [resolvable:$true] %s467
      %470 = dma.vmem_to_hbm [thread:$0]  %s468, 512, %s4, [#allocation4]
    $region29: #{tpu_custom_call.1} parent=1 // pred_fallthru
      _
    // Predicated region
    $region30: #{tpu_custom_call.1} parent=1 // pred_check
      _
    $region31: #{tpu_custom_call.1} parent=1 // pred_check_branch
      %472 = sbr.rel (0) target = $region33
    $region32: #{tpu_custom_call.1} parent=1 // pred_region
      %473 = dma.done [#allocation4], 512
    $region33: #{tpu_custom_call.1} parent=1 // pred_fallthru
      _
    %474 = vsyncpa [#allocation3], 1
    %475 = vsyncpa [#allocation6], 1
    %476 = vsyncpa [#allocation4], 1

</llo_original>
